<compile_context>
chip_gen: v6e
topology: v6e:2x2x1
jax: 0.10.0
libtpu: 0.0.40
codegen_flags: <defaults>
</compile_context>

<pallas_src>
import functools

import jax
import jax.numpy as jnp
from jax import lax
from jax.experimental import pallas as pl
from jax.experimental.pallas import tpu as pltpu


def _moving_avg_kernel(x_ref, o_ref, xp_ref, *, kernel_size, stride, pad, out_len):
    # x_ref : (TR, L)          input rows, time on the lane axis
    # o_ref : (TR, out_len)    output rows (lane-dense stores)
    # xp_ref: (TR, L + 2*pad)  f32 scratch holding the replicate-padded rows
    rows, l = x_ref.shape

    # Single up-cast to f32, then replicate-pad into scratch.
    xf = x_ref[...].astype(jnp.float32)
    xp_ref[:, pad:pad + l] = xf
    if pad > 0:
        xp_ref[:, 0:pad] = jnp.broadcast_to(xf[:, 0:1], (rows, pad))
        xp_ref[:, pad + l:pad + l + pad] = jnp.broadcast_to(xf[:, l - 1:l], (rows, pad))

    # Stride-1 sliding sum: kernel_size lane-shifted loads/adds over the padded
    # rows.  kernel_size is small (25 for SimMTM), so a direct unrolled sum is
    # cheaper and simpler than a cumsum-difference formulation.
    full_len = l + 2 * pad - kernel_size + 1
    acc = xp_ref[:, 0:full_len]
    for i in range(1, kernel_size):
        acc = acc + xp_ref[:, i:i + full_len]
    avg = acc * (1.0 / kernel_size)

    if stride == 1:
        out = avg  # full_len == out_len
    else:
        # Decimate every stride-th time step with a one-hot selection matmul so
        # all lane accesses stay dense.
        sel = (
            lax.broadcasted_iota(jnp.int32, (full_len, out_len), 0)
            == stride * lax.broadcasted_iota(jnp.int32, (full_len, out_len), 1)
        ).astype(jnp.float32)
        out = jnp.dot(avg, sel, preferred_element_type=jnp.float32)

    o_ref[...] = out.astype(o_ref.dtype)


def _pick_row_tile(rows, per_row_bytes, target_bytes=4 << 20):
    """Row tile that is the full extent or a multiple of 8 and fits the budget."""
    if rows * per_row_bytes <= target_bytes:
        return rows
    best = None
    for d in range(8, rows + 1, 8):
        if rows % d == 0 and d * per_row_bytes <= target_bytes:
            best = d
    # Fallback: full extent is always layout-legal (last-two-dims-equal rule).
    return best if best is not None else rows


def moving_avg(x, kernel_size, stride=1):
    """x: (B, L, C) float array. Returns (B, out_len, C), matching the PyTorch module."""
    assert kernel_size >= 1 and stride >= 1
    b, l, c = x.shape
    pad = (kernel_size - 1) // 2
    l_pad = l + 2 * pad
    out_len = (l_pad - kernel_size) // stride + 1
    assert out_len >= 1

    # Lane-dense layout: time on lanes, (B*C) rows packing the sublanes densely.
    rows = b * c
    xt = jnp.transpose(x, (0, 2, 1)).reshape(rows, l)  # layout plumbing only

    itemsize = jnp.dtype(x.dtype).itemsize
    # Double-buffered input/output tiles + single f32 scratch, per row.
    per_row_bytes = 2 * (l + out_len) * itemsize + l_pad * 4
    tr = _pick_row_tile(rows, per_row_bytes)

    kernel = functools.partial(
        _moving_avg_kernel,
        kernel_size=kernel_size,
        stride=stride,
        pad=pad,
        out_len=out_len,
    )

    yt = pl.pallas_call(
        kernel,
        out_shape=jax.ShapeDtypeStruct((rows, out_len), x.dtype),
        grid_spec=pltpu.PrefetchScalarGridSpec(
            num_scalar_prefetch=0,
            grid=(rows // tr,),
            # Last dims equal the full array dims; row tile is 8-aligned or full.
            in_specs=[pl.BlockSpec((tr, l), lambda i: (i, 0))],
            out_specs=pl.BlockSpec((tr, out_len), lambda i: (i, 0)),
            scratch_shapes=[pltpu.VMEM((tr, l_pad), jnp.float32)],
        ),
        compiler_params=pltpu.CompilerParams(
            dimension_semantics=("parallel",),
        ),
    )(xt)

    return jnp.transpose(yt.reshape(b, c, out_len), (0, 2, 1))  # (B, out_len, C)


def _reference(x, kernel_size, stride):
    # Pure-JAX reference matching the PyTorch module.
    b, l, c = x.shape
    pad = (kernel_size - 1) // 2
    front = jnp.broadcast_to(x[:, 0:1, :], (b, pad, c))
    end = jnp.broadcast_to(x[:, -1:, :], (b, pad, c))
    xp = jnp.concatenate([front, x, end], axis=1)
    out_len = (xp.shape[1] - kernel_size) // stride + 1
    outs = []
    for j in range(out_len):
        outs.append(jnp.mean(xp[:, j * stride:j * stride + kernel_size, :], axis=1))
    return jnp.stack(outs, axis=1)


if __name__ == "__main__":
    key = jax.random.PRNGKey(0)

    # (B, L, C) as in the module's input convention.
    B, L, C = 2, 16, 8
    x = jax.random.normal(key, (B, L, C), dtype=jnp.float32)

    # stride == 1, small kernel.
    y = jax.block_until_ready(moving_avg(x, kernel_size=5, stride=1))
    y_ref = _reference(x, 5, 1)
    assert y.shape == y_ref.shape, (y.shape, y_ref.shape)
    assert jnp.allclose(y, y_ref, atol=1e-5, rtol=1e-5)

    # stride > 1: exercises the one-hot MXU decimation path.
    y2 = jax.block_until_ready(moving_avg(x, kernel_size=5, stride=2))
    y2_ref = _reference(x, 5, 2)
    assert y2.shape == y2_ref.shape, (y2.shape, y2_ref.shape)
    assert jnp.allclose(y2, y2_ref, atol=1e-5, rtol=1e-5)

    # SimMTM's actual configuration: kernel_size=25, stride=1, and C=7 channels
    # (non-multiple-of-8 rows exercise the full-extent row-tile path).
    x7 = jax.random.normal(key, (2, 16, 7), dtype=jnp.float32)
    y3 = jax.block_until_ready(moving_avg(x7, kernel_size=25, stride=1))
    y3_ref = _reference(x7, 25, 1)
    assert y3.shape == y3_ref.shape, (y3.shape, y3_ref.shape)
    assert jnp.allclose(y3, y3_ref, atol=1e-5, rtol=1e-5)

    print("KERNEL_OK")
</pallas_src>

<mosaic_0001>
module attributes {stable_mosaic.version = 11 : i64} {
  func.func @_moving_avg_kernel(%arg0: i32, %arg1: memref<16x16xf32, #tpu.memory_space<vmem>>, %arg2: memref<16x16xf32, #tpu.memory_space<vmem>>, %arg3: memref<16x20xf32, #tpu.memory_space<vmem>>) attributes {dimension_semantics = [#tpu.dimension_semantics<parallel>], iteration_bounds = array<i64: 1>, scalar_prefetch = 0 : i64, scratch_operands = 1 : i64, tpu.core_type = #tpu.core_type<tc>, window_params = [{transform_indices = @transform_0, window_bounds = array<i64: 16, 16>}, {transform_indices = @transform_1, window_bounds = array<i64: 16, 16>}]} {
    %c0 = arith.constant 0 : index
    %c0_0 = arith.constant 0 : index
    %0 = vector.load %arg1[%c0, %c0_0] : memref<16x16xf32, #tpu.memory_space<vmem>>, vector<16x16xf32>
    %c0_1 = arith.constant 0 : index
    %c2 = arith.constant 2 : index
    %1 = vector.load %arg3[%c0_1, %c2] : memref<16x20xf32, #tpu.memory_space<vmem>>, vector<16x16xf32>
    tpu.vector_store %arg3[%c0_1, %c2], %0 {strides = array<i32>} : memref<16x20xf32, #tpu.memory_space<vmem>>, vector<16x16xf32>,
    %2 = vector.extract_strided_slice %0 {offsets = [0, 0], sizes = [16, 1], strides = [1, 1]} : vector<16x16xf32> to vector<16x1xf32>
    %3 = vector.shape_cast %2 : vector<16x1xf32> to vector<16x1xf32>
    %4 = vector.broadcast %3 : vector<16x1xf32> to vector<16x2xf32>
    %c0_2 = arith.constant 0 : index
    %c0_3 = arith.constant 0 : index
    %5 = vector.load %arg3[%c0_2, %c0_3] : memref<16x20xf32, #tpu.memory_space<vmem>>, vector<16x2xf32>
    tpu.vector_store %arg3[%c0_2, %c0_3], %4 {strides = array<i32>} : memref<16x20xf32, #tpu.memory_space<vmem>>, vector<16x2xf32>,
    %6 = vector.extract_strided_slice %0 {offsets = [0, 15], sizes = [16, 1], strides = [1, 1]} : vector<16x16xf32> to vector<16x1xf32>
    %7 = vector.shape_cast %6 : vector<16x1xf32> to vector<16x1xf32>
    %8 = vector.broadcast %7 : vector<16x1xf32> to vector<16x2xf32>
    %c0_4 = arith.constant 0 : index
    %c18 = arith.constant 18 : index
    %9 = vector.load %arg3[%c0_4, %c18] : memref<16x20xf32, #tpu.memory_space<vmem>>, vector<16x2xf32>
    tpu.vector_store %arg3[%c0_4, %c18], %8 {strides = array<i32>} : memref<16x20xf32, #tpu.memory_space<vmem>>, vector<16x2xf32>,
    %c0_5 = arith.constant 0 : index
    %c0_6 = arith.constant 0 : index
    %10 = vector.load %arg3[%c0_5, %c0_6] : memref<16x20xf32, #tpu.memory_space<vmem>>, vector<16x16xf32>
    %c0_7 = arith.constant 0 : index
    %c1 = arith.constant 1 : index
    %11 = vector.load %arg3[%c0_7, %c1] : memref<16x20xf32, #tpu.memory_space<vmem>>, vector<16x16xf32>
    %12 = arith.addf %10, %11 : vector<16x16xf32>
    %c0_8 = arith.constant 0 : index
    %c2_9 = arith.constant 2 : index
    %13 = vector.load %arg3[%c0_8, %c2_9] : memref<16x20xf32, #tpu.memory_space<vmem>>, vector<16x16xf32>
    %14 = arith.addf %12, %13 : vector<16x16xf32>
    %c0_10 = arith.constant 0 : index
    %c3 = arith.constant 3 : index
    %15 = vector.load %arg3[%c0_10, %c3] : memref<16x20xf32, #tpu.memory_space<vmem>>, vector<16x16xf32>
    %16 = arith.addf %14, %15 : vector<16x16xf32>
    %c0_11 = arith.constant 0 : index
    %c4 = arith.constant 4 : index
    %17 = vector.load %arg3[%c0_11, %c4] : memref<16x20xf32, #tpu.memory_space<vmem>>, vector<16x16xf32>
    %18 = arith.addf %16, %17 : vector<16x16xf32>
    %cst = arith.constant 2.000000e-01 : f32
    %19 = vector.broadcast %cst : f32 to vector<16x16xf32>
    %20 = arith.mulf %18, %19 : vector<16x16xf32>
    %c0_12 = arith.constant 0 : index
    %c0_13 = arith.constant 0 : index
    %21 = vector.load %arg2[%c0_12, %c0_13] : memref<16x16xf32, #tpu.memory_space<vmem>>, vector<16x16xf32>
    tpu.vector_store %arg2[%c0_12, %c0_13], %20 {strides = array<i32>} : memref<16x16xf32, #tpu.memory_space<vmem>>, vector<16x16xf32>,
    return
  }
  func.func @transform_0(%arg0: i32) -> (i32, i32) {
    %c0_i32 = arith.constant 0 : i32
    %c0_i32_0 = arith.constant 0 : i32
    return %arg0, %c0_i32 : i32, i32
  }
  func.func @transform_1(%arg0: i32) -> (i32, i32) {
    %c0_i32 = arith.constant 0 : i32
    %c0_i32_0 = arith.constant 0 : i32
    return %arg0, %c0_i32 : i32, i32
  }
}

</mosaic_0001>

<llo_original>
// kernel: tpu_custom_call.1
$region0: #{tpu_custom_call.1}
  #allocation0 [shape = 'u32[]', space=smem, size = 0x4, offset = 0x4, fixed_abs, tag = 'smem constant byte address 0x4 - core index']
  #allocation1 [shape = 'u32[144,128]{1,0:T(1,128)}', space=vmem, size = 0x12000, scoped, tag = 'internal scratch']
  #allocation2 [shape = 'f32[16,20]{1,0:T(8,128)}', space=vmem, size = 0x2000, scoped, tag = 'scratch operand']
  %s0 = inlined_call_operand.hbm [shape: f32[16,16], index: 0, kind: input, shape index: {}]
  %s1 = inlined_call_operand.hbm [shape: f32[16,16], index: 1, kind: output, shape index: {}]
  %s2 = sld [smem:[#allocation0]]
  $region18: #{tpu_custom_call.1} parent=0
    _
  %s4 = ssub.s32 1, %s2
  %s5 = scalar_select 0, %s4, %s2
  $region1: #{tpu_custom_call.1} parent=0
    #allocation3 [shape = 'u8[8192]{0}', space=vmem, size = 0x2000, scoped, tag = 'input window, operand 0, single buffered']
    #allocation4 [shape = 's32[1]{0}', space=sflag, size = 0x4, scoped, tag = 'scoped memory for tpu_custom_call.1']
    #allocation5 [shape = 's32[1]{0}', space=sflag, size = 0x4, scoped, tag = 'scoped memory for tpu_custom_call.1']
    #allocation6 [shape = 'u8[8192]{0}', space=vmem, size = 0x2000, scoped, tag = 'output window, operand 0, single buffered']
    %6 = vsyncpa [#allocation4], 0
    %7 = vsyncpa [#allocation5], 0
    // Predicated region
    $region2: #{tpu_custom_call.1} parent=1 // pred_check
      _
    $region3: #{tpu_custom_call.1} parent=1 // pred_check_branch
      %9 = sbr.rel (0) target = $region5
    $region4: #{tpu_custom_call.1} parent=1 // pred_region
      %s11 = ssub.s32 256, 256
      %12 = vsyncadd [#allocation4], %s11
      %s13 = sshll.u32 [#allocation3], 4
      %s14 = int_to_ptr.vmem [resolvable:$true] %s13
      %19 = dma.hbm_to_vmem [thread:$0]  %s0, 256, %s14, [#allocation4], 128, 128, 8
    $region5: #{tpu_custom_call.1} parent=1 // pred_fallthru
      _
    // Predicated region
    $region6: #{tpu_custom_call.1} parent=1 // pred_check
      _
    $region7: #{tpu_custom_call.1} parent=1 // pred_check_branch
      %21 = sbr.rel (0) target = $region9
    $region8: #{tpu_custom_call.1} parent=1 // pred_region
      %22 = dma.done [#allocation4], 256
    $region9: #{tpu_custom_call.1} parent=1 // pred_fallthru
      _
    %v23 = vld [vmem:[#allocation3] sm:$0xff]
    %v24 = vld [vmem:[#allocation3 + $0x8] sm:$0xff]
    %27 = vrot.lane.b32.xlu0 %v23, 2
    %v28 = vpop.permute.xlu0 %27
    %29 = vrot.lane.b32.xlu0 %v24, 2
    %v30 = vpop.permute.xlu0 %29
    %vm33 = vcmask 146448
    %34 = vst.msk [vmem:[#allocation2] sm:$0xff] %vm33, %v28
    %35 = vst.msk [vmem:[#allocation2 + $0x8] sm:$0xff] %vm33, %v30
    %36 = vset.pattern.permute.xlu0 0
    %37 = vperm.xlu0 %36, %v23
    %v38 = vpop.permute.xlu0 %37
    %40 = vset.pattern.permute.xlu0 0
    %41 = vperm.xlu0 %40, %v24
    %v42 = vpop.permute.xlu0 %41
    %vm44 = vcmask 15360
    %45 = vst.msk [vmem:[#allocation2] sm:$0xff] %vm44, %v38
    %46 = vst.msk [vmem:[#allocation2 + $0x8] sm:$0xff] %vm44, %v42
    %47 = vset.pattern.permute.xlu0 15
    %48 = vperm.xlu0 %47, %v23
    %v49 = vpop.permute.xlu0 %48
    %51 = vset.pattern.permute.xlu0 15
    %52 = vperm.xlu0 %51, %v24
    %v53 = vpop.permute.xlu0 %52
    %vm55 = vcmask 162960
    %56 = vst.msk [vmem:[#allocation2] sm:$0xff] %vm55, %v49
    %57 = vst.msk [vmem:[#allocation2 + $0x8] sm:$0xff] %vm55, %v53
    %v58 = vld [vmem:[#allocation2] sm:$0xff]
    %v59 = vld [vmem:[#allocation2 + $0x8] sm:$0xff]
    %62 = vrot.lane.b32.xlu0 %v58, 127
    %v63 = vpop.permute.xlu0 %62
    %64 = vrot.lane.b32.xlu0 %v59, 127
    %v65 = vpop.permute.xlu0 %64
    %v68 = vadd.f32 %v58, %v63
    %v69 = vadd.f32 %v59, %v65
    %70 = vrot.lane.b32.xlu0 %v58, 126
    %v71 = vpop.permute.xlu0 %70
    %72 = vrot.lane.b32.xlu0 %v59, 126
    %v73 = vpop.permute.xlu0 %72
    %v76 = vadd.f32 %v68, %v71
    %v77 = vadd.f32 %v69, %v73
    %78 = vrot.lane.b32.xlu0 %v58, 125
    %v79 = vpop.permute.xlu0 %78
    %80 = vrot.lane.b32.xlu0 %v59, 125
    %v81 = vpop.permute.xlu0 %80
    %v84 = vadd.f32 %v76, %v79
    %v85 = vadd.f32 %v77, %v81
    %86 = vrot.lane.b32.xlu0 %v58, 124
    %v87 = vpop.permute.xlu0 %86
    %88 = vrot.lane.b32.xlu0 %v59, 124
    %v89 = vpop.permute.xlu0 %88
    %v92 = vadd.f32 %v84, %v87
    %v93 = vadd.f32 %v85, %v89
    %v94 = vmul.f32 %v92, 0.2
    %v95 = vmul.f32 %v93, 0.2
    %vm96 = vcmask 130048
    %97 = vst.msk [vmem:[#allocation6] sm:$0xff] %vm96, %v94
    %98 = vst.msk [vmem:[#allocation6 + $0x8] sm:$0xff] %vm96, %v95
    // Predicated region
    $region10: #{tpu_custom_call.1} parent=1 // pred_check
      _
    $region11: #{tpu_custom_call.1} parent=1 // pred_check_branch
      %100 = sbr.rel (0) target = $region13
    $region12: #{tpu_custom_call.1} parent=1 // pred_region
      %s102 = ssub.s32 256, 256
      %103 = vsyncadd [#allocation5], %s102
      %s104 = sshll.u32 [#allocation6], 4
      %s105 = int_to_ptr.vmem [resolvable:$true] %s104
      %110 = dma.vmem_to_hbm [thread:$0]  %s105, 256, %s1, [#allocation5], 128, 128, 8
    $region13: #{tpu_custom_call.1} parent=1 // pred_fallthru
      _
    // Predicated region
    $region14: #{tpu_custom_call.1} parent=1 // pred_check
      _
    $region15: #{tpu_custom_call.1} parent=1 // pred_check_branch
      %112 = sbr.rel (0) target = $region17
    $region16: #{tpu_custom_call.1} parent=1 // pred_region
      %113 = dma.done [#allocation5], 256
    $region17: #{tpu_custom_call.1} parent=1 // pred_fallthru
      _
    %114 = vsyncpa [#allocation4], 1
    %115 = vsyncpa [#allocation5], 1

</llo_original>
